<compile_context>
chip_gen: v5e
topology: v5e:2x2
jax: 0.10.0
libtpu: 0.0.40
codegen_flags: <defaults>
</compile_context>

<pallas_src>
import functools

import jax
import jax.numpy as jnp
from jax.experimental import pallas as pl
from jax.experimental.pallas import tpu as pltpu

_LATENT = 20        # decoder l4 is nn.Linear(20, 256) -> latent must be 20
_OUT_PACK = 128     # lane-dense packed output width: [y | mu | logvar | pad]
_TB_CAP = 2048      # max batch-tile rows


def _round_up(n, m):
    return -(-n // m) * m


def _cdiv(a, b):
    return -(-a // b)


def _choose_tile(batch):
    """Waste-aware batch tile: smallest tile count, tile rounded to 8 rows."""
    num_tiles = _cdiv(batch, _TB_CAP)
    # Give v7x's second TensorCore work when the batch is large enough that the
    # extra grid step is negligible vs. per-step overhead.
    if num_tiles == 1 and batch >= 1024:
        num_tiles = 2
    tb = _round_up(_cdiv(batch, num_tiles), 8)
    b_pad = _round_up(batch, tb)
    return tb, b_pad


def _vae_mlp_kernel(
    x_ref, eps_ref,
    w1_ref, b1_ref, w2_ref, b2_ref,
    whead_ref, bhead_ref,                    # l3 folded into fused [mu|logvar] head
    w4_ref, b4_ref, w5_ref, b5_ref, w6_ref, b6_ref,
    packed_ref,
    *, latent_size,
):
    """Encoder + reparametrization + decoder for one (TB, feat) batch tile."""
    f32 = jnp.float32
    bf16 = jnp.bfloat16

    # Hoisted bias loads (f32, single load / broadcast each).
    b1 = b1_ref[...]
    b2 = b2_ref[...]
    bhead = bhead_ref[...]
    b4 = b4_ref[...]
    b5 = b5_ref[...]
    b6 = b6_ref[...]

    # --- encoder (bf16 operands, f32 accumulation) ---
    x = x_ref[...].astype(bf16)
    h = jnp.maximum(
        jnp.dot(x, w1_ref[...], preferred_element_type=f32) + b1, 0.0)
    h = jnp.maximum(
        jnp.dot(h.astype(bf16), w2_ref[...], preferred_element_type=f32) + b2, 0.0)

    # Fused (l3 + mu/logvar) head: one MXU pass -> (TB, 2*latent).
    mulv = jnp.dot(h.astype(bf16), whead_ref[...], preferred_element_type=f32) + bhead
    mu = mulv[:, :latent_size]
    logvar = mulv[:, latent_size:]

    # --- reparametrization (eps supplied from host for determinism) ---
    z = mu + eps_ref[...] * jnp.exp(0.5 * logvar)

    # --- decoder ---
    d = jnp.maximum(
        jnp.dot(z.astype(bf16), w4_ref[...], preferred_element_type=f32) + b4, 0.0)
    d = jnp.maximum(
        jnp.dot(d.astype(bf16), w5_ref[...], preferred_element_type=f32) + b5, 0.0)
    y = jnp.dot(d.astype(bf16), w6_ref[...], preferred_element_type=f32) + b6

    # Lane-dense packed write: [ y | mu | logvar | zero-pad ] -> 128 lanes.
    tb = y.shape[0]
    pad = jnp.zeros((tb, _OUT_PACK - 1 - 2 * latent_size), f32)
    packed_ref[...] = jnp.concatenate([y, mulv, pad], axis=-1).astype(packed_ref.dtype)


def init_params(key, input_size, latent_size):
    """Deterministic PyTorch-style (uniform +-1/sqrt(fan_in)) Linear init."""
    dims = [
        ("l1", input_size, 256),
        ("l2", 256, 128),
        ("l3", 128, 64),
        ("mu", 64, latent_size),
        ("logvar", 64, latent_size),
        ("l4", 20, 256),
        ("l5", 256, 128),
        ("l6", 128, 1),
    ]
    params = {}
    for name, fan_in, fan_out in dims:
        key, kw, kb = jax.random.split(key, 3)
        bound = 1.0 / jnp.sqrt(jnp.float32(fan_in))
        w = jax.random.uniform(kw, (fan_in, fan_out), jnp.float32, -bound, bound)
        b = jax.random.uniform(kb, (1, fan_out), jnp.float32, -bound, bound)
        params[name] = (w, b)
    return params


@functools.partial(jax.jit, static_argnames=("latent_size",))
def weather_regression_forward(x, eps, params, latent_size=_LATENT):
    assert latent_size == _LATENT, "decoder l4 is Linear(20, 256); latent must be 20"
    batch, input_size = x.shape

    tb, b_pad = _choose_tile(batch)
    grid = (b_pad // tb,)

    if b_pad != batch:
        x = jnp.pad(x, ((0, b_pad - batch), (0, 0)))
        eps = jnp.pad(eps, ((0, b_pad - batch), (0, 0)))

    # --- weight packing (wrapper-side, f32 algebra then bf16 cast) ---
    w1, b1 = params["l1"]
    w2, b2 = params["l2"]
    w3, b3 = params["l3"]
    wmu, bmu = params["mu"]
    wlv, blv = params["logvar"]
    w4, b4 = params["l4"]
    w5, b5 = params["l5"]
    w6, b6 = params["l6"]

    # Fuse mu/logvar heads, then fold l3 (no ReLU between l3 and the heads):
    #   h3 = h W3 + b3 ;  mulv = h3 Wmulv + bmulv
    #   => mulv = h (W3 Wmulv) + (b3 Wmulv + bmulv)
    wmulv = jnp.concatenate([wmu, wlv], axis=1)            # (64, 2L)
    bmulv = jnp.concatenate([bmu, blv], axis=1)            # (1, 2L)
    whead = w3 @ wmulv                                     # (128, 2L)
    bhead = b3 @ wmulv + bmulv                             # (1, 2L)

    bf16 = jnp.bfloat16
    weights = [w1.astype(bf16), w2.astype(bf16), whead.astype(bf16),
               w4.astype(bf16), w5.astype(bf16), w6.astype(bf16)]
    biases = [b1, b2, bhead, b4, b5, b6]                   # f32
    flat_params = [weights[0], biases[0], weights[1], biases[1],
                   weights[2], biases[2], weights[3], biases[3],
                   weights[4], biases[4], weights[5], biases[5]]

    def resident(a):
        # Same block every grid step -> DMA'd once, stays VMEM-resident.
        return pl.BlockSpec(a.shape, lambda i: (0, 0))

    in_specs = [
        pl.BlockSpec((tb, input_size), lambda i: (i, 0)),   # x tile
        pl.BlockSpec((tb, latent_size), lambda i: (i, 0)),  # eps tile
    ] + [resident(a) for a in flat_params]

    out_specs = pl.BlockSpec((tb, _OUT_PACK), lambda i: (i, 0))

    layer_dims = [
        (input_size, 256), (256, 128), (128, 2 * latent_size),
        (latent_size, 256), (256, 128), (128, 1),
    ]
    flops = 2 * b_pad * sum(k * n for k, n in layer_dims)
    param_bytes = sum(int(a.size) * a.dtype.itemsize for a in flat_params)
    bytes_accessed = (param_bytes
                      + int(x.size) * 4 + int(eps.size) * 4
                      + b_pad * _OUT_PACK * 4)

    packed = pl.pallas_call(
        functools.partial(_vae_mlp_kernel, latent_size=latent_size),
        out_shape=jax.ShapeDtypeStruct((b_pad, _OUT_PACK), jnp.float32),
        grid_spec=pltpu.PrefetchScalarGridSpec(
            num_scalar_prefetch=0,
            grid=grid,
            in_specs=in_specs,
            out_specs=out_specs,
        ),
        compiler_params=pltpu.CompilerParams(
            dimension_semantics=("parallel",),   # megacore sharding on v7x
            vmem_limit_bytes=32 * 1024 * 1024,   # safe headroom for TB up to 2048
        ),
        cost_estimate=pl.CostEstimate(
            flops=flops,
            transcendentals=b_pad * latent_size,
            bytes_accessed=bytes_accessed,
        ),
    )(x, eps, *flat_params)

    # Single pass over the packed slab; split y / mu / logvar from one slice.
    head = packed[:batch, :1 + 2 * latent_size]
    y = head[:, 0:1]
    mu = head[:, 1:1 + latent_size]
    logvar = head[:, 1 + latent_size:1 + 2 * latent_size]
    return y, mu, logvar


def reference_forward(x, eps, params):
    """Pure-JAX f32 reference mirroring the PyTorch module, for correctness check."""
    def lin(name, a):
        w, b = params[name]
        return a @ w + b

    h = jax.nn.relu(lin("l1", x))
    h = jax.nn.relu(lin("l2", h))
    h = lin("l3", h)
    mu = lin("mu", h)
    logvar = lin("logvar", h)
    z = mu + eps * jnp.exp(0.5 * logvar)
    d = jax.nn.relu(lin("l4", z))
    d = jax.nn.relu(lin("l5", d))
    y = lin("l6", d)
    return y, mu, logvar


def _check(params, key, batch, input_size, latent_size, tol):
    k_x, k_eps = jax.random.split(key)
    x = jax.random.normal(k_x, (batch, input_size), jnp.float32)
    eps = jax.random.normal(k_eps, (batch, latent_size), jnp.float32)

    y, mu, logvar = weather_regression_forward(x, eps, params, latent_size=latent_size)
    jax.block_until_ready((y, mu, logvar))

    y_ref, mu_ref, lv_ref = reference_forward(x, eps, params)
    assert y.shape == (batch, 1) and mu.shape == (batch, latent_size)
    assert logvar.shape == (batch, latent_size)
    # bf16 matmul operands (f32 accumulation) -> relaxed tolerance vs. f32 ref.
    assert jnp.allclose(y, y_ref, atol=tol, rtol=tol)
    assert jnp.allclose(mu, mu_ref, atol=tol, rtol=tol)
    assert jnp.allclose(logvar, lv_ref, atol=tol, rtol=tol)


if __name__ == "__main__":
    key = jax.random.PRNGKey(0)
    k_params, k_small, k_odd = jax.random.split(key, 3)

    input_size = 16     # number of weather features after StandardScaler
    latent_size = 20    # decoder l4 expects 20 inputs, so latent must be 20

    params = init_params(k_params, input_size, latent_size)

    # Small batch (single tile) and an awkward batch size (exercises the
    # waste-aware tile/padding path).
    _check(params, k_small, batch=8, input_size=input_size,
           latent_size=latent_size, tol=2e-2)
    _check(params, k_odd, batch=200, input_size=input_size,
           latent_size=latent_size, tol=2e-2)

    print("KERNEL_OK")
</pallas_src>

<mosaic_0001>
module attributes {stable_mosaic.version = 11 : i64} {
  func.func @_vae_mlp_kernel(%arg0: i32, %arg1: memref<8x16xf32, #tpu.memory_space<vmem>>, %arg2: memref<8x20xf32, #tpu.memory_space<vmem>>, %arg3: memref<16x256xbf16, #tpu.memory_space<vmem>>, %arg4: memref<1x256xf32, #tpu.memory_space<vmem>>, %arg5: memref<256x128xbf16, #tpu.memory_space<vmem>>, %arg6: memref<1x128xf32, #tpu.memory_space<vmem>>, %arg7: memref<128x40xbf16, #tpu.memory_space<vmem>>, %arg8: memref<1x40xf32, #tpu.memory_space<vmem>>, %arg9: memref<20x256xbf16, #tpu.memory_space<vmem>>, %arg10: memref<1x256xf32, #tpu.memory_space<vmem>>, %arg11: memref<256x128xbf16, #tpu.memory_space<vmem>>, %arg12: memref<1x128xf32, #tpu.memory_space<vmem>>, %arg13: memref<128x1xbf16, #tpu.memory_space<vmem>>, %arg14: memref<1x1xf32, #tpu.memory_space<vmem>>, %arg15: memref<8x128xf32, #tpu.memory_space<vmem>>) attributes {dimension_semantics = [#tpu.dimension_semantics<parallel>], iteration_bounds = array<i64: 1>, scalar_prefetch = 0 : i64, scratch_operands = 0 : i64, tpu.core_type = #tpu.core_type<tc>, window_params = [{transform_indices = @transform_0, window_bounds = array<i64: 8, 16>}, {transform_indices = @transform_1, window_bounds = array<i64: 8, 20>}, {pipeline_mode = #tpu.pipeline_mode<synchronous>, transform_indices = @transform_2, window_bounds = array<i64: 16, 256>}, {pipeline_mode = #tpu.pipeline_mode<synchronous>, transform_indices = @transform_3, window_bounds = array<i64: 1, 256>}, {pipeline_mode = #tpu.pipeline_mode<synchronous>, transform_indices = @transform_4, window_bounds = array<i64: 256, 128>}, {pipeline_mode = #tpu.pipeline_mode<synchronous>, transform_indices = @transform_5, window_bounds = array<i64: 1, 128>}, {pipeline_mode = #tpu.pipeline_mode<synchronous>, transform_indices = @transform_6, window_bounds = array<i64: 128, 40>}, {pipeline_mode = #tpu.pipeline_mode<synchronous>, transform_indices = @transform_7, window_bounds = array<i64: 1, 40>}, {pipeline_mode = #tpu.pipeline_mode<synchronous>, transform_indices = @transform_8, window_bounds = array<i64: 20, 256>}, {pipeline_mode = #tpu.pipeline_mode<synchronous>, transform_indices = @transform_9, window_bounds = array<i64: 1, 256>}, {pipeline_mode = #tpu.pipeline_mode<synchronous>, transform_indices = @transform_10, window_bounds = array<i64: 256, 128>}, {pipeline_mode = #tpu.pipeline_mode<synchronous>, transform_indices = @transform_11, window_bounds = array<i64: 1, 128>}, {pipeline_mode = #tpu.pipeline_mode<synchronous>, transform_indices = @transform_12, window_bounds = array<i64: 128, 1>}, {pipeline_mode = #tpu.pipeline_mode<synchronous>, transform_indices = @transform_13, window_bounds = array<i64: 1, 1>}, {transform_indices = @transform_14, window_bounds = array<i64: 8, 128>}]} {
    %c0 = arith.constant 0 : index
    %c0_0 = arith.constant 0 : index
    %0 = vector.load %arg4[%c0, %c0_0] : memref<1x256xf32, #tpu.memory_space<vmem>>, vector<1x256xf32>
    %c0_1 = arith.constant 0 : index
    %c0_2 = arith.constant 0 : index
    %1 = vector.load %arg6[%c0_1, %c0_2] : memref<1x128xf32, #tpu.memory_space<vmem>>, vector<1x128xf32>
    %c0_3 = arith.constant 0 : index
    %c0_4 = arith.constant 0 : index
    %2 = vector.load %arg8[%c0_3, %c0_4] : memref<1x40xf32, #tpu.memory_space<vmem>>, vector<1x40xf32>
    %c0_5 = arith.constant 0 : index
    %c0_6 = arith.constant 0 : index
    %3 = vector.load %arg10[%c0_5, %c0_6] : memref<1x256xf32, #tpu.memory_space<vmem>>, vector<1x256xf32>
    %c0_7 = arith.constant 0 : index
    %c0_8 = arith.constant 0 : index
    %4 = vector.load %arg12[%c0_7, %c0_8] : memref<1x128xf32, #tpu.memory_space<vmem>>, vector<1x128xf32>
    %c0_9 = arith.constant 0 : index
    %c0_10 = arith.constant 0 : index
    %5 = vector.load %arg14[%c0_9, %c0_10] : memref<1x1xf32, #tpu.memory_space<vmem>>, vector<1x1xf32>
    %c0_11 = arith.constant 0 : index
    %c0_12 = arith.constant 0 : index
    %6 = vector.load %arg1[%c0_11, %c0_12] : memref<8x16xf32, #tpu.memory_space<vmem>>, vector<8x16xf32>
    %7 = arith.truncf %6 : vector<8x16xf32> to vector<8x16xbf16>
    %c0_13 = arith.constant 0 : index
    %c0_14 = arith.constant 0 : index
    %8 = vector.load %arg3[%c0_13, %c0_14] : memref<16x256xbf16, #tpu.memory_space<vmem>>, vector<16x256xbf16>
    %cst = arith.constant dense<0.000000e+00> : vector<8x256xf32>
    %9 = tpu.matmul %7, %8, %cst {dimension_numbers = #tpu.dot_dimension_numbers<[1], [0], [0], [1], [0, 0, 1, 1], [], []>} : vector<8x16xbf16>, vector<16x256xbf16>, vector<8x256xf32> -> vector<8x256xf32>
    %10 = vector.broadcast %0 : vector<1x256xf32> to vector<8x256xf32>
    %11 = arith.addf %9, %10 : vector<8x256xf32>
    %cst_15 = arith.constant 0.000000e+00 : f32
    %12 = vector.broadcast %cst_15 : f32 to vector<8x256xf32>
    %13 = arith.maximumf %11, %12 : vector<8x256xf32>
    %14 = arith.truncf %13 : vector<8x256xf32> to vector<8x256xbf16>
    %c0_16 = arith.constant 0 : index
    %c0_17 = arith.constant 0 : index
    %15 = vector.load %arg5[%c0_16, %c0_17] : memref<256x128xbf16, #tpu.memory_space<vmem>>, vector<256x128xbf16>
    %cst_18 = arith.constant dense<0.000000e+00> : vector<8x128xf32>
    %16 = tpu.matmul %14, %15, %cst_18 {dimension_numbers = #tpu.dot_dimension_numbers<[1], [0], [0], [1], [0, 0, 1, 1], [], []>} : vector<8x256xbf16>, vector<256x128xbf16>, vector<8x128xf32> -> vector<8x128xf32>
    %17 = vector.broadcast %1 : vector<1x128xf32> to vector<8x128xf32>
    %18 = arith.addf %16, %17 : vector<8x128xf32>
    %cst_19 = arith.constant 0.000000e+00 : f32
    %19 = vector.broadcast %cst_19 : f32 to vector<8x128xf32>
    %20 = arith.maximumf %18, %19 : vector<8x128xf32>
    %21 = arith.truncf %20 : vector<8x128xf32> to vector<8x128xbf16>
    %c0_20 = arith.constant 0 : index
    %c0_21 = arith.constant 0 : index
    %22 = vector.load %arg7[%c0_20, %c0_21] : memref<128x40xbf16, #tpu.memory_space<vmem>>, vector<128x40xbf16>
    %cst_22 = arith.constant dense<0.000000e+00> : vector<8x40xf32>
    %23 = tpu.matmul %21, %22, %cst_22 {dimension_numbers = #tpu.dot_dimension_numbers<[1], [0], [0], [1], [0, 0, 1, 1], [], []>} : vector<8x128xbf16>, vector<128x40xbf16>, vector<8x40xf32> -> vector<8x40xf32>
    %24 = vector.broadcast %2 : vector<1x40xf32> to vector<8x40xf32>
    %25 = arith.addf %23, %24 : vector<8x40xf32>
    %26 = vector.extract_strided_slice %25 {offsets = [0, 0], sizes = [8, 20], strides = [1, 1]} : vector<8x40xf32> to vector<8x20xf32>
    %27 = vector.extract_strided_slice %25 {offsets = [0, 20], sizes = [8, 20], strides = [1, 1]} : vector<8x40xf32> to vector<8x20xf32>
    %c0_23 = arith.constant 0 : index
    %c0_24 = arith.constant 0 : index
    %28 = vector.load %arg2[%c0_23, %c0_24] : memref<8x20xf32, #tpu.memory_space<vmem>>, vector<8x20xf32>
    %cst_25 = arith.constant 5.000000e-01 : f32
    %29 = vector.broadcast %cst_25 : f32 to vector<8x20xf32>
    %30 = arith.mulf %29, %27 : vector<8x20xf32>
    %31 = math.exp %30 : vector<8x20xf32>
    %32 = arith.mulf %28, %31 : vector<8x20xf32>
    %33 = arith.addf %26, %32 : vector<8x20xf32>
    %34 = arith.truncf %33 : vector<8x20xf32> to vector<8x20xbf16>
    %c0_26 = arith.constant 0 : index
    %c0_27 = arith.constant 0 : index
    %35 = vector.load %arg9[%c0_26, %c0_27] : memref<20x256xbf16, #tpu.memory_space<vmem>>, vector<20x256xbf16>
    %cst_28 = arith.constant dense<0.000000e+00> : vector<8x256xf32>
    %36 = tpu.matmul %34, %35, %cst_28 {dimension_numbers = #tpu.dot_dimension_numbers<[1], [0], [0], [1], [0, 0, 1, 1], [], []>} : vector<8x20xbf16>, vector<20x256xbf16>, vector<8x256xf32> -> vector<8x256xf32>
    %37 = vector.broadcast %3 : vector<1x256xf32> to vector<8x256xf32>
    %38 = arith.addf %36, %37 : vector<8x256xf32>
    %cst_29 = arith.constant 0.000000e+00 : f32
    %39 = vector.broadcast %cst_29 : f32 to vector<8x256xf32>
    %40 = arith.maximumf %38, %39 : vector<8x256xf32>
    %41 = arith.truncf %40 : vector<8x256xf32> to vector<8x256xbf16>
    %c0_30 = arith.constant 0 : index
    %c0_31 = arith.constant 0 : index
    %42 = vector.load %arg11[%c0_30, %c0_31] : memref<256x128xbf16, #tpu.memory_space<vmem>>, vector<256x128xbf16>
    %cst_32 = arith.constant dense<0.000000e+00> : vector<8x128xf32>
    %43 = tpu.matmul %41, %42, %cst_32 {dimension_numbers = #tpu.dot_dimension_numbers<[1], [0], [0], [1], [0, 0, 1, 1], [], []>} : vector<8x256xbf16>, vector<256x128xbf16>, vector<8x128xf32> -> vector<8x128xf32>
    %44 = vector.broadcast %4 : vector<1x128xf32> to vector<8x128xf32>
    %45 = arith.addf %43, %44 : vector<8x128xf32>
    %cst_33 = arith.constant 0.000000e+00 : f32
    %46 = vector.broadcast %cst_33 : f32 to vector<8x128xf32>
    %47 = arith.maximumf %45, %46 : vector<8x128xf32>
    %48 = arith.truncf %47 : vector<8x128xf32> to vector<8x128xbf16>
    %c0_34 = arith.constant 0 : index
    %c0_35 = arith.constant 0 : index
    %49 = vector.load %arg13[%c0_34, %c0_35] : memref<128x1xbf16, #tpu.memory_space<vmem>>, vector<128x1xbf16>
    %cst_36 = arith.constant dense<0.000000e+00> : vector<8x1xf32>
    %50 = tpu.matmul %48, %49, %cst_36 {dimension_numbers = #tpu.dot_dimension_numbers<[1], [0], [0], [1], [0, 0, 1, 1], [], []>} : vector<8x128xbf16>, vector<128x1xbf16>, vector<8x1xf32> -> vector<8x1xf32>
    %51 = vector.broadcast %5 : vector<1x1xf32> to vector<8x1xf32>
    %52 = arith.addf %50, %51 : vector<8x1xf32>
    %cst_37 = arith.constant 0.000000e+00 : f32
    %53 = vector.broadcast %cst_37 : f32 to vector<8x87xf32>
    %54 = tpu.concatenate %52, %25, %53 in 1 : vector<8x1xf32>, vector<8x40xf32>, vector<8x87xf32> -> vector<8x128xf32>
    %c0_38 = arith.constant 0 : index
    %c0_39 = arith.constant 0 : index
    %55 = vector.load %arg15[%c0_38, %c0_39] : memref<8x128xf32, #tpu.memory_space<vmem>>, vector<8x128xf32>
    tpu.vector_store %arg15[%c0_38, %c0_39], %54 {strides = array<i32>} : memref<8x128xf32, #tpu.memory_space<vmem>>, vector<8x128xf32>,
    return
  }
  func.func @transform_0(%arg0: i32) -> (i32, i32) {
    %c0_i32 = arith.constant 0 : i32
    %c0_i32_0 = arith.constant 0 : i32
    return %arg0, %c0_i32 : i32, i32
  }
  func.func @transform_1(%arg0: i32) -> (i32, i32) {
    %c0_i32 = arith.constant 0 : i32
    %c0_i32_0 = arith.constant 0 : i32
    return %arg0, %c0_i32 : i32, i32
  }
  func.func @transform_2(%arg0: i32) -> (i32, i32) {
    %c0_i32 = arith.constant 0 : i32
    %c0_i32_0 = arith.constant 0 : i32
    %c0_i32_1 = arith.constant 0 : i32
    return %c0_i32, %c0_i32_0 : i32, i32
  }
  func.func @transform_3(%arg0: i32) -> (i32, i32) {
    %c0_i32 = arith.constant 0 : i32
    %c0_i32_0 = arith.constant 0 : i32
    %c0_i32_1 = arith.constant 0 : i32
    return %c0_i32, %c0_i32_0 : i32, i32
  }
  func.func @transform_4(%arg0: i32) -> (i32, i32) {
    %c0_i32 = arith.constant 0 : i32
    %c0_i32_0 = arith.constant 0 : i32
    %c0_i32_1 = arith.constant 0 : i32
    return %c0_i32, %c0_i32_0 : i32, i32
  }
  func.func @transform_5(%arg0: i32) -> (i32, i32) {
    %c0_i32 = arith.constant 0 : i32
    %c0_i32_0 = arith.constant 0 : i32
    %c0_i32_1 = arith.constant 0 : i32
    return %c0_i32, %c0_i32_0 : i32, i32
  }
  func.func @transform_6(%arg0: i32) -> (i32, i32) {
    %c0_i32 = arith.constant 0 : i32
    %c0_i32_0 = arith.constant 0 : i32
    %c0_i32_1 = arith.constant 0 : i32
    return %c0_i32, %c0_i32_0 : i32, i32
  }
  func.func @transform_7(%arg0: i32) -> (i32, i32) {
    %c0_i32 = arith.constant 0 : i32
    %c0_i32_0 = arith.constant 0 : i32
    %c0_i32_1 = arith.constant 0 : i32
    return %c0_i32, %c0_i32_0 : i32, i32
  }
  func.func @transform_8(%arg0: i32) -> (i32, i32) {
    %c0_i32 = arith.constant 0 : i32
    %c0_i32_0 = arith.constant 0 : i32
    %c0_i32_1 = arith.constant 0 : i32
    return %c0_i32, %c0_i32_0 : i32, i32
  }
  func.func @transform_9(%arg0: i32) -> (i32, i32) {
    %c0_i32 = arith.constant 0 : i32
    %c0_i32_0 = arith.constant 0 : i32
    %c0_i32_1 = arith.constant 0 : i32
    return %c0_i32, %c0_i32_0 : i32, i32
  }
  func.func @transform_10(%arg0: i32) -> (i32, i32) {
    %c0_i32 = arith.constant 0 : i32
    %c0_i32_0 = arith.constant 0 : i32
    %c0_i32_1 = arith.constant 0 : i32
    return %c0_i32, %c0_i32_0 : i32, i32
  }
  func.func @transform_11(%arg0: i32) -> (i32, i32) {
    %c0_i32 = arith.constant 0 : i32
    %c0_i32_0 = arith.constant 0 : i32
    %c0_i32_1 = arith.constant 0 : i32
    return %c0_i32, %c0_i32_0 : i32, i32
  }
  func.func @transform_12(%arg0: i32) -> (i32, i32) {
    %c0_i32 = arith.constant 0 : i32
    %c0_i32_0 = arith.constant 0 : i32
    %c0_i32_1 = arith.constant 0 : i32
    return %c0_i32, %c0_i32_0 : i32, i32
  }
  func.func @transform_13(%arg0: i32) -> (i32, i32) {
    %c0_i32 = arith.constant 0 : i32
    %c0_i32_0 = arith.constant 0 : i32
    %c0_i32_1 = arith.constant 0 : i32
    return %c0_i32, %c0_i32_0 : i32, i32
  }
  func.func @transform_14(%arg0: i32) -> (i32, i32) {
    %c0_i32 = arith.constant 0 : i32
    %c0_i32_0 = arith.constant 0 : i32
    return %arg0, %c0_i32 : i32, i32
  }
}

</mosaic_0001>

<llo_original>
// kernel: weather_regression_forward.1
$region0: #{weather_regression_forward.1}
  #allocation0 [shape = 'u32[]', space=smem, size = 0x4, offset = 0x4, fixed_abs, tag = 'smem constant byte address 0x4 - core index']
  #allocation1 [shape = 'u32[72,128]{1,0:T(1,128)}', space=vmem, size = 0x9000, scoped, tag = 'internal scratch']
  #allocation2 [shape = 'f32[1,1]{1,0:T(1,128)S(1)}', space=vmem, size = 0x200, scoped, tag = 'scoped memory for weather_regression_forward.1']
  %s0 = inlined_call_operand.vmem [shape: f32[8,16], index: 0, kind: input, shape index: {}]
  %s1 = inlined_call_operand.vmem [shape: f32[8,20], index: 1, kind: input, shape index: {}]
  %s2 = inlined_call_operand.vmem [shape: bf16[16,256], index: 2, kind: input, shape index: {}]
  %s3 = inlined_call_operand.vmem [shape: f32[1,256], index: 3, kind: input, shape index: {}]
  %s4 = inlined_call_operand.vmem [shape: bf16[256,128], index: 4, kind: input, shape index: {}]
  %s5 = inlined_call_operand.vmem [shape: f32[1,128], index: 5, kind: input, shape index: {}]
  %s6 = inlined_call_operand.vmem [shape: bf16[128,40], index: 6, kind: input, shape index: {}]
  %s7 = inlined_call_operand.vmem [shape: f32[1,40], index: 7, kind: input, shape index: {}]
  %s8 = inlined_call_operand.vmem [shape: bf16[20,256], index: 8, kind: input, shape index: {}]
  %s9 = inlined_call_operand.vmem [shape: f32[1,256], index: 9, kind: input, shape index: {}]
  %s10 = inlined_call_operand.vmem [shape: bf16[256,128], index: 10, kind: input, shape index: {}]
  %s11 = inlined_call_operand.vmem [shape: f32[1,128], index: 11, kind: input, shape index: {}]
  %s12 = inlined_call_operand.vmem [shape: bf16[128,1], index: 12, kind: input, shape index: {}]
  %s13 = inlined_call_operand.<no memory space> [shape: f32[1,1], index: 13, kind: input, shape index: {}]
  %s14 = inlined_call_operand.vmem [shape: f32[8,128], index: 14, kind: output, shape index: {}]
  %s15 = sld [smem:[#allocation0]]
  $region66: #{weather_regression_forward.1} parent=0
    _
  %s17 = ssub.s32 1, %s15
  %s18 = scalar_select 0, %s17, %s15
  %v19 = vstv %s13
  %20 = vst [vmem:[#allocation2] sm:$0x1] %v19
  // Predicated region
  $region2: #{weather_regression_forward.1} parent=0 // pred_check
    _
  $region3: #{weather_regression_forward.1} parent=0 // pred_check_branch
    %22 = sbr.rel (0) target = $region5
  $region4: #{weather_regression_forward.1} parent=0 // pred_region
    _
  $region5: #{weather_regression_forward.1} parent=0 // pred_fallthru
    _
  // Predicated region
  $region6: #{weather_regression_forward.1} parent=0 // pred_check
    _
  $region7: #{weather_regression_forward.1} parent=0 // pred_check_branch
    %24 = sbr.rel (0) target = $region9
  $region8: #{weather_regression_forward.1} parent=0 // pred_region
    _
  $region9: #{weather_regression_forward.1} parent=0 // pred_fallthru
    _
  // Predicated region
  $region10: #{weather_regression_forward.1} parent=0 // pred_check
    _
  $region11: #{weather_regression_forward.1} parent=0 // pred_check_branch
    %26 = sbr.rel (0) target = $region13
  $region12: #{weather_regression_forward.1} parent=0 // pred_region
    _
  $region13: #{weather_regression_forward.1} parent=0 // pred_fallthru
    _
  // Predicated region
  $region14: #{weather_regression_forward.1} parent=0 // pred_check
    _
  $region15: #{weather_regression_forward.1} parent=0 // pred_check_branch
    %28 = sbr.rel (0) target = $region17
  $region16: #{weather_regression_forward.1} parent=0 // pred_region
    _
  $region17: #{weather_regression_forward.1} parent=0 // pred_fallthru
    _
  // Predicated region
  $region18: #{weather_regression_forward.1} parent=0 // pred_check
    _
  $region19: #{weather_regression_forward.1} parent=0 // pred_check_branch
    %30 = sbr.rel (0) target = $region21
  $region20: #{weather_regression_forward.1} parent=0 // pred_region
    _
  $region21: #{weather_regression_forward.1} parent=0 // pred_fallthru
    _
  // Predicated region
  $region22: #{weather_regression_forward.1} parent=0 // pred_check
    _
  $region23: #{weather_regression_forward.1} parent=0 // pred_check_branch
    %32 = sbr.rel (0) target = $region25
  $region24: #{weather_regression_forward.1} parent=0 // pred_region
    _
  $region25: #{weather_regression_forward.1} parent=0 // pred_fallthru
    _
  // Predicated region
  $region26: #{weather_regression_forward.1} parent=0 // pred_check
    _
  $region27: #{weather_regression_forward.1} parent=0 // pred_check_branch
    %34 = sbr.rel (0) target = $region29
  $region28: #{weather_regression_forward.1} parent=0 // pred_region
    _
  $region29: #{weather_regression_forward.1} parent=0 // pred_fallthru
    _
  // Predicated region
  $region30: #{weather_regression_forward.1} parent=0 // pred_check
    _
  $region31: #{weather_regression_forward.1} parent=0 // pred_check_branch
    %36 = sbr.rel (0) target = $region33
  $region32: #{weather_regression_forward.1} parent=0 // pred_region
    _
  $region33: #{weather_regression_forward.1} parent=0 // pred_fallthru
    _
  // Predicated region
  $region34: #{weather_regression_forward.1} parent=0 // pred_check
    _
  $region35: #{weather_regression_forward.1} parent=0 // pred_check_branch
    %38 = sbr.rel (0) target = $region37
  $region36: #{weather_regression_forward.1} parent=0 // pred_region
    _
  $region37: #{weather_regression_forward.1} parent=0 // pred_fallthru
    _
  // Predicated region
  $region38: #{weather_regression_forward.1} parent=0 // pred_check
    _
  $region39: #{weather_regression_forward.1} parent=0 // pred_check_branch
    %40 = sbr.rel (0) target = $region41
  $region40: #{weather_regression_forward.1} parent=0 // pred_region
    _
  $region41: #{weather_regression_forward.1} parent=0 // pred_fallthru
    _
  // Predicated region
  $region42: #{weather_regression_forward.1} parent=0 // pred_check
    _
  $region43: #{weather_regression_forward.1} parent=0 // pred_check_branch
    %42 = sbr.rel (0) target = $region45
  $region44: #{weather_regression_forward.1} parent=0 // pred_region
    _
  $region45: #{weather_regression_forward.1} parent=0 // pred_fallthru
    _
  // Predicated region
  $region46: #{weather_regression_forward.1} parent=0 // pred_check
    _
  $region47: #{weather_regression_forward.1} parent=0 // pred_check_branch
    %44 = sbr.rel (0) target = $region49
  $region48: #{weather_regression_forward.1} parent=0 // pred_region
    _
  $region49: #{weather_regression_forward.1} parent=0 // pred_fallthru
    _
  // Predicated region
  $region50: #{weather_regression_forward.1} parent=0 // pred_check
    _
  $region51: #{weather_regression_forward.1} parent=0 // pred_check_branch
    %46 = sbr.rel (0) target = $region53
  $region52: #{weather_regression_forward.1} parent=0 // pred_region
    _
  $region53: #{weather_regression_forward.1} parent=0 // pred_fallthru
    _
  // Predicated region
  $region54: #{weather_regression_forward.1} parent=0 // pred_check
    _
  $region55: #{weather_regression_forward.1} parent=0 // pred_check_branch
    %48 = sbr.rel (0) target = $region57
  $region56: #{weather_regression_forward.1} parent=0 // pred_region
    _
  $region57: #{weather_regression_forward.1} parent=0 // pred_fallthru
    _
  %v50 = vld [vmem:[%s3] sm:$0x3]
  %v51 = vld [vmem:[%s5] sm:$0x1]
  %v52 = vld [vmem:[%s7] sm:$0x1]
  %v53 = vld [vmem:[%s9] sm:$0x3]
  %v54 = vld [vmem:[%s11] sm:$0x1]
  %v55 = vld [vmem:[#allocation2] sm:$0x1]
  %v56 = vld [vmem:[%s0] sm:$0xff]
  %v57 = vpack.c.bf16 %v56, %v56
  %v58 = vld [vmem:[%s2] sm:$0xff]
  %v59 = vld [vmem:[%s2 + $0x8] sm:$0xff]
  %v61 = vperm.slane %v50, 0
  %v62 = vperm.slane %v50, 1
  %v67 = vunpack.c.l.b16 %v58
  %v68 = vunpack.c.h.b16 %v58
  %v69 = vunpack.c.l.b16 %v59
  %v70 = vunpack.c.h.b16 %v59
  %v71 = vpack.c.b16 %v69, %v67
  %v72 = vpack.c.b16 %v70, %v68
  %vm75 = vcmask 130048
  %v77 = vsel %vm75, %v57, 0
  %79 = vmatpush.bf16.msra.mxu0 0
  %80 = vmatpush.bf16.msra.mxu0 0
  %81 = vmatpush.bf16.msra.mxu0 0
  %82 = vmatpush.bf16.msra.mxu0 0
  %83 = vmatpush.bf16.msra.mxu0 0
  %84 = vmatpush.bf16.msra.mxu0 0
  %85 = vmatpush.bf16.msra.mxu0 0
  %86 = vmatpush.bf16.msra.mxu0 %v71
  %87 = vmatmul.bf16.gmra.mxu0 %v77
  %v88 = vpop.f32.mrf.mxu0
  %v89 = vadd.f32 %v61, %v88
  %v90 = vpop.f32.mrf.mxu0
  %91 = vdwg.mxu0
  %92 = vmatpush.bf16.msra.mxu0 0
  %93 = vmatpush.bf16.msra.mxu0 0
  %94 = vmatpush.bf16.msra.mxu0 0
  %95 = vmatpush.bf16.msra.mxu0 0
  %96 = vmatpush.bf16.msra.mxu0 0
  %97 = vmatpush.bf16.msra.mxu0 0
  %98 = vmatpush.bf16.msra.mxu0 0
  %99 = vmatpush.bf16.msra.mxu0 %v72
  %100 = vmatmul.bf16.gmra.mxu0 %v77
  %v101 = vpop.f32.mrf.mxu0
  %v102 = vadd.f32 %v62, %v101
  %v103 = vpop.f32.mrf.mxu0
  %104 = vdwg.mxu0
  %v105 = vmax.f32 %v89, 0.0
  %v106 = vmax.f32 %v102, 0.0
  %v107 = vpack.c.bf16 %v105, %v105
  %v108 = vpack.c.bf16 %v106, %v106
  %v109 = vld [vmem:[%s4] sm:$0xf]
  %v110 = vld [vmem:[%s4 + $0x4] sm:$0xf]
  %v111 = vld [vmem:[%s4 + $0x8] sm:$0xf]
  %v112 = vld [vmem:[%s4 + $0xc] sm:$0xf]
  %v113 = vld [vmem:[%s4 + $0x10] sm:$0xf]
  %v114 = vld [vmem:[%s4 + $0x14] sm:$0xf]
  %v115 = vld [vmem:[%s4 + $0x18] sm:$0xf]
  %v116 = vld [vmem:[%s4 + $0x1c] sm:$0xf]
  %v117 = vld [vmem:[%s4 + $0x20] sm:$0xf]
  %v118 = vld [vmem:[%s4 + $0x24] sm:$0xf]
  %v119 = vld [vmem:[%s4 + $0x28] sm:$0xf]
  %v120 = vld [vmem:[%s4 + $0x2c] sm:$0xf]
  %v121 = vld [vmem:[%s4 + $0x30] sm:$0xf]
  %v122 = vld [vmem:[%s4 + $0x34] sm:$0xf]
  %v123 = vld [vmem:[%s4 + $0x38] sm:$0xf]
  %v124 = vld [vmem:[%s4 + $0x3c] sm:$0xf]
  %v125 = vld [vmem:[%s4 + $0x40] sm:$0xf]
  %v126 = vld [vmem:[%s4 + $0x44] sm:$0xf]
  %v127 = vld [vmem:[%s4 + $0x48] sm:$0xf]
  %v128 = vld [vmem:[%s4 + $0x4c] sm:$0xf]
  %v129 = vld [vmem:[%s4 + $0x50] sm:$0xf]
  %v130 = vld [vmem:[%s4 + $0x54] sm:$0xf]
  %v131 = vld [vmem:[%s4 + $0x58] sm:$0xf]
  %v132 = vld [vmem:[%s4 + $0x5c] sm:$0xf]
  %v133 = vld [vmem:[%s4 + $0x60] sm:$0xf]
  %v134 = vld [vmem:[%s4 + $0x64] sm:$0xf]
  %v135 = vld [vmem:[%s4 + $0x68] sm:$0xf]
  %v136 = vld [vmem:[%s4 + $0x6c] sm:$0xf]
  %v137 = vld [vmem:[%s4 + $0x70] sm:$0xf]
  %v138 = vld [vmem:[%s4 + $0x74] sm:$0xf]
  %v139 = vld [vmem:[%s4 + $0x78] sm:$0xf]
  %v140 = vld [vmem:[%s4 + $0x7c] sm:$0xf]
  %v142 = vperm.slane %v51, 0
  %v176 = vunpack.c.l.b16 %v109
  %v177 = vunpack.c.l.b16 %v110
  %v178 = vunpack.c.l.b16 %v111
  %v179 = vunpack.c.l.b16 %v112
  %v180 = vunpack.c.l.b16 %v113
  %v181 = vunpack.c.l.b16 %v114
  %v182 = vunpack.c.l.b16 %v115
  %v183 = vunpack.c.l.b16 %v116
  %v184 = vunpack.c.l.b16 %v117
  %v185 = vunpack.c.l.b16 %v118
  %v186 = vunpack.c.l.b16 %v119
  %v187 = vunpack.c.l.b16 %v120
  %v188 = vunpack.c.l.b16 %v121
  %v189 = vunpack.c.l.b16 %v122
  %v190 = vunpack.c.l.b16 %v123
  %v191 = vunpack.c.l.b16 %v124
  %v192 = vunpack.c.l.b16 %v125
  %v193 = vunpack.c.l.b16 %v126
  %v194 = vunpack.c.l.b16 %v127
  %v195 = vunpack.c.l.b16 %v128
  %v196 = vunpack.c.l.b16 %v129
  %v197 = vunpack.c.l.b16 %v130
  %v198 = vunpack.c.l.b16 %v131
  %v199 = vunpack.c.l.b16 %v132
  %v200 = vunpack.c.l.b16 %v133
  %v201 = vunpack.c.l.b16 %v134
  %v202 = vunpack.c.l.b16 %v135
  %v203 = vunpack.c.l.b16 %v136
  %v204 = vunpack.c.l.b16 %v137
  %v205 = vunpack.c.l.b16 %v138
  %v206 = vunpack.c.l.b16 %v139
  %v207 = vunpack.c.l.b16 %v140
  %v208 = vpack.c.b16 %v177, %v176
  %v209 = vpack.c.b16 %v179, %v178
  %v210 = vpack.c.b16 %v181, %v180
  %v211 = vpack.c.b16 %v183, %v182
  %v212 = vpack.c.b16 %v185, %v184
  %v213 = vpack.c.b16 %v187, %v186
  %v214 = vpack.c.b16 %v189, %v188
  %v215 = vpack.c.b16 %v191, %v190
  %v216 = vpack.c.b16 %v193, %v192
  %v217 = vpack.c.b16 %v195, %v194
  %v218 = vpack.c.b16 %v197, %v196
  %v219 = vpack.c.b16 %v199, %v198
  %v220 = vpack.c.b16 %v201, %v200
  %v221 = vpack.c.b16 %v203, %v202
  %v222 = vpack.c.b16 %v205, %v204
  %v223 = vpack.c.b16 %v207, %v206
  %240 = vmatpush.bf16.msra.mxu0 %v215
  %241 = vmatpush.bf16.msra.mxu0 %v214
  %242 = vmatpush.bf16.msra.mxu0 %v213
  %243 = vmatpush.bf16.msra.mxu0 %v212
  %244 = vmatpush.bf16.msra.mxu0 %v211
  %245 = vmatpush.bf16.msra.mxu0 %v210
  %246 = vmatpush.bf16.msra.mxu0 %v209
  %247 = vmatpush.bf16.msra.mxu0 %v208
  %248 = vmatmul.bf16.gmra.mxu0 %v107
  %v249 = vpop.f32.mrf.mxu0
  %v250 = vadd.f32 %v142, %v249
  %v251 = vpop.f32.mrf.mxu0
  %252 = vdwg.mxu0
  %253 = vmatpush.bf16.msra.mxu0 %v223
  %254 = vmatpush.bf16.msra.mxu0 %v222
  %255 = vmatpush.bf16.msra.mxu0 %v221
  %256 = vmatpush.bf16.msra.mxu0 %v220
  %257 = vmatpush.bf16.msra.mxu0 %v219
  %258 = vmatpush.bf16.msra.mxu0 %v218
  %259 = vmatpush.bf16.msra.mxu0 %v217
  %260 = vmatpush.bf16.msra.mxu0 %v216
  %261 = vmatmul.bf16.gmra.mxu0 %v108
  %v262 = vpop.f32.mrf.mxu0
  %v263 = vadd.f32 %v250, %v262
  %v264 = vpop.f32.mrf.mxu0
  %265 = vdwg.mxu0
  %v266 = vmax.f32 %v263, 0.0
  %v267 = vpack.c.bf16 %v266, %v266
  %v268 = vld [vmem:[%s6] sm:$0xf]
  %v269 = vld [vmem:[%s6 + $0x4] sm:$0xf]
  %v270 = vld [vmem:[%s6 + $0x8] sm:$0xf]
  %v271 = vld [vmem:[%s6 + $0xc] sm:$0xf]
  %v272 = vld [vmem:[%s6 + $0x10] sm:$0xf]
  %v273 = vld [vmem:[%s6 + $0x14] sm:$0xf]
  %v274 = vld [vmem:[%s6 + $0x18] sm:$0xf]
  %v275 = vld [vmem:[%s6 + $0x1c] sm:$0xf]
  %v276 = vld [vmem:[%s6 + $0x20] sm:$0xf]
  %v277 = vld [vmem:[%s6 + $0x24] sm:$0xf]
  %v278 = vld [vmem:[%s6 + $0x28] sm:$0xf]
  %v279 = vld [vmem:[%s6 + $0x2c] sm:$0xf]
  %v280 = vld [vmem:[%s6 + $0x30] sm:$0xf]
  %v281 = vld [vmem:[%s6 + $0x34] sm:$0xf]
  %v282 = vld [vmem:[%s6 + $0x38] sm:$0xf]
  %v283 = vld [vmem:[%s6 + $0x3c] sm:$0xf]
  %v285 = vperm.slane %v52, 0
  %v303 = vunpack.c.l.b16 %v268
  %v304 = vunpack.c.l.b16 %v269
  %v305 = vunpack.c.l.b16 %v270
  %v306 = vunpack.c.l.b16 %v271
  %v307 = vunpack.c.l.b16 %v272
  %v308 = vunpack.c.l.b16 %v273
  %v309 = vunpack.c.l.b16 %v274
  %v310 = vunpack.c.l.b16 %v275
  %v311 = vunpack.c.l.b16 %v276
  %v312 = vunpack.c.l.b16 %v277
  %v313 = vunpack.c.l.b16 %v278
  %v314 = vunpack.c.l.b16 %v279
  %v315 = vunpack.c.l.b16 %v280
  %v316 = vunpack.c.l.b16 %v281
  %v317 = vunpack.c.l.b16 %v282
  %v318 = vunpack.c.l.b16 %v283
  %v319 = vpack.c.b16 %v304, %v303
  %v320 = vpack.c.b16 %v306, %v305
  %v321 = vpack.c.b16 %v308, %v307
  %v322 = vpack.c.b16 %v310, %v309
  %v323 = vpack.c.b16 %v312, %v311
  %v324 = vpack.c.b16 %v314, %v313
  %v325 = vpack.c.b16 %v316, %v315
  %v326 = vpack.c.b16 %v318, %v317
  %335 = vmatpush.bf16.msra.mxu0 %v326
  %336 = vmatpush.bf16.msra.mxu0 %v325
  %337 = vmatpush.bf16.msra.mxu0 %v324
  %338 = vmatpush.bf16.msra.mxu0 %v323
  %339 = vmatpush.bf16.msra.mxu0 %v322
  %340 = vmatpush.bf16.msra.mxu0 %v321
  %341 = vmatpush.bf16.msra.mxu0 %v320
  %342 = vmatpush.bf16.msra.mxu0 %v319
  %343 = vmatmul.bf16.gmra.mxu0 %v267
  %v344 = vpop.f32.mrf.mxu0
  %v345 = vadd.f32 %v285, %v344
  %v346 = vpop.f32.mrf.mxu0
  %347 = vdwg.mxu0
  %v348 = vld [vmem:[%s1] sm:$0xff]
  %v349 = vmul.f32 %v345, 0.5
  %v350 = vmul.f32 %v349, 1.442695
  %v351 = vpow.pop %v350
  %353 = vrot.lane.b32.xlu0 %v351, 108
  %v354 = vpop.permute.xlu0 %353
  %v356 = vmul.f32 %v348, %v354
  %v357 = vadd.f32 %v345, %v356
  %v358 = vpack.c.bf16 %v357, %v357
  %v359 = vld [vmem:[%s8] sm:$0xff]
  %v360 = vld [vmem:[%s8 + $0x8] sm:$0xff]
  %v361 = vld [vmem:[%s8 + $0x10] sm:$0x33]
  %v363 = vperm.slane %v53, 0
  %v364 = vperm.slane %v53, 1
  %v370 = vunpack.c.l.b16 %v359
  %v371 = vunpack.c.h.b16 %v359
  %v372 = vunpack.c.l.b16 %v360
  %v373 = vunpack.c.h.b16 %v360
  %v374 = vunpack.c.l.b16 %v361
  %v375 = vunpack.c.h.b16 %v361
  %v376 = vpack.c.b16 %v372, %v370
  %v377 = vpack.c.b16 %v373, %v371
  %v378 = vpack.c.b16 %v374, %v374
  %v379 = vpack.c.b16 %v375, %v375
  %vm382 = vcmask 162816
  %v384 = vsel %vm382, %v358, 0
  %vm386 = vcmask 1041408
  %v388 = vsel %vm386, %v378, 0
  %v391 = vsel %vm386, %v379, 0
  %393 = vmatpush.bf16.msra.mxu0 0
  %394 = vmatpush.bf16.msra.mxu0 0
  %395 = vmatpush.bf16.msra.mxu0 0
  %396 = vmatpush.bf16.msra.mxu0 0
  %397 = vmatpush.bf16.msra.mxu0 0
  %398 = vmatpush.bf16.msra.mxu0 0
  %399 = vmatpush.bf16.msra.mxu0 %v388
  %400 = vmatpush.bf16.msra.mxu0 %v376
  %401 = vmatmul.bf16.gmra.mxu0 %v384
  %v402 = vpop.f32.mrf.mxu0
  %v403 = vadd.f32 %v363, %v402
  %v404 = vpop.f32.mrf.mxu0
  %405 = vdwg.mxu0
  %406 = vmatpush.bf16.msra.mxu0 0
  %407 = vmatpush.bf16.msra.mxu0 0
  %408 = vmatpush.bf16.msra.mxu0 0
  %409 = vmatpush.bf16.msra.mxu0 0
  %410 = vmatpush.bf16.msra.mxu0 0
  %411 = vmatpush.bf16.msra.mxu0 0
  %412 = vmatpush.bf16.msra.mxu0 %v391
  %413 = vmatpush.bf16.msra.mxu0 %v377
  %414 = vmatmul.bf16.gmra.mxu0 %v384
  %v415 = vpop.f32.mrf.mxu0
  %v416 = vadd.f32 %v364, %v415
  %v417 = vpop.f32.mrf.mxu0
  %418 = vdwg.mxu0
  %v419 = vmax.f32 %v403, 0.0
  %v420 = vmax.f32 %v416, 0.0
  %v421 = vpack.c.bf16 %v419, %v419
  %v422 = vpack.c.bf16 %v420, %v420
  %v423 = vld [vmem:[%s10] sm:$0xf]
  %v424 = vld [vmem:[%s10 + $0x4] sm:$0xf]
  %v425 = vld [vmem:[%s10 + $0x8] sm:$0xf]
  %v426 = vld [vmem:[%s10 + $0xc] sm:$0xf]
  %v427 = vld [vmem:[%s10 + $0x10] sm:$0xf]
  %v428 = vld [vmem:[%s10 + $0x14] sm:$0xf]
  %v429 = vld [vmem:[%s10 + $0x18] sm:$0xf]
  %v430 = vld [vmem:[%s10 + $0x1c] sm:$0xf]
  %v431 = vld [vmem:[%s10 + $0x20] sm:$0xf]
  %v432 = vld [vmem:[%s10 + $0x24] sm:$0xf]
  %v433 = vld [vmem:[%s10 + $0x28] sm:$0xf]
  %v434 = vld [vmem:[%s10 + $0x2c] sm:$0xf]
  %v435 = vld [vmem:[%s10 + $0x30] sm:$0xf]
  %v436 = vld [vmem:[%s10 + $0x34] sm:$0xf]
  %v437 = vld [vmem:[%s10 + $0x38] sm:$0xf]
  %v438 = vld [vmem:[%s10 + $0x3c] sm:$0xf]
  %v439 = vld [vmem:[%s10 + $0x40] sm:$0xf]
  %v440 = vld [vmem:[%s10 + $0x44] sm:$0xf]
  %v441 = vld [vmem:[%s10 + $0x48] sm:$0xf]
  %v442 = vld [vmem:[%s10 + $0x4c] sm:$0xf]
  %v443 = vld [vmem:[%s10 + $0x50] sm:$0xf]
  %v444 = vld [vmem:[%s10 + $0x54] sm:$0xf]
  %v445 = vld [vmem:[%s10 + $0x58] sm:$0xf]
  %v446 = vld [vmem:[%s10 + $0x5c] sm:$0xf]
  %v447 = vld [vmem:[%s10 + $0x60] sm:$0xf]
  %v448 = vld [vmem:[%s10 + $0x64] sm:$0xf]
  %v449 = vld [vmem:[%s10 + $0x68] sm:$0xf]
  %v450 = vld [vmem:[%s10 + $0x6c] sm:$0xf]
  %v451 = vld [vmem:[%s10 + $0x70] sm:$0xf]
  %v452 = vld [vmem:[%s10 + $0x74] sm:$0xf]
  %v453 = vld [vmem:[%s10 + $0x78] sm:$0xf]
  %v454 = vld [vmem:[%s10 + $0x7c] sm:$0xf]
  %v456 = vperm.slane %v54, 0
  %v490 = vunpack.c.l.b16 %v423
  %v491 = vunpack.c.l.b16 %v424
  %v492 = vunpack.c.l.b16 %v425
  %v493 = vunpack.c.l.b16 %v426
  %v494 = vunpack.c.l.b16 %v427
  %v495 = vunpack.c.l.b16 %v428
  %v496 = vunpack.c.l.b16 %v429
  %v497 = vunpack.c.l.b16 %v430
  %v498 = vunpack.c.l.b16 %v431
  %v499 = vunpack.c.l.b16 %v432
  %v500 = vunpack.c.l.b16 %v433
  %v501 = vunpack.c.l.b16 %v434
  %v502 = vunpack.c.l.b16 %v435
  %v503 = vunpack.c.l.b16 %v436
  %v504 = vunpack.c.l.b16 %v437
  %v505 = vunpack.c.l.b16 %v438
  %v506 = vunpack.c.l.b16 %v439
  %v507 = vunpack.c.l.b16 %v440
  %v508 = vunpack.c.l.b16 %v441
  %v509 = vunpack.c.l.b16 %v442
  %v510 = vunpack.c.l.b16 %v443
  %v511 = vunpack.c.l.b16 %v444
  %v512 = vunpack.c.l.b16 %v445
  %v513 = vunpack.c.l.b16 %v446
  %v514 = vunpack.c.l.b16 %v447
  %v515 = vunpack.c.l.b16 %v448
  %v516 = vunpack.c.l.b16 %v449
  %v517 = vunpack.c.l.b16 %v450
  %v518 = vunpack.c.l.b16 %v451
  %v519 = vunpack.c.l.b16 %v452
  %v520 = vunpack.c.l.b16 %v453
  %v521 = vunpack.c.l.b16 %v454
  %v522 = vpack.c.b16 %v491, %v490
  %v523 = vpack.c.b16 %v493, %v492
  %v524 = vpack.c.b16 %v495, %v494
  %v525 = vpack.c.b16 %v497, %v496
  %v526 = vpack.c.b16 %v499, %v498
  %v527 = vpack.c.b16 %v501, %v500
  %v528 = vpack.c.b16 %v503, %v502
  %v529 = vpack.c.b16 %v505, %v504
  %v530 = vpack.c.b16 %v507, %v506
  %v531 = vpack.c.b16 %v509, %v508
  %v532 = vpack.c.b16 %v511, %v510
  %v533 = vpack.c.b16 %v513, %v512
  %v534 = vpack.c.b16 %v515, %v514
  %v535 = vpack.c.b16 %v517, %v516
  %v536 = vpack.c.b16 %v519, %v518
  %v537 = vpack.c.b16 %v521, %v520
  %554 = vmatpush.bf16.msra.mxu0 %v529
  %555 = vmatpush.bf16.msra.mxu0 %v528
  %556 = vmatpush.bf16.msra.mxu0 %v527
  %557 = vmatpush.bf16.msra.mxu0 %v526
  %558 = vmatpush.bf16.msra.mxu0 %v525
  %559 = vmatpush.bf16.msra.mxu0 %v524
  %560 = vmatpush.bf16.msra.mxu0 %v523
  %561 = vmatpush.bf16.msra.mxu0 %v522
  %562 = vmatmul.bf16.gmra.mxu0 %v421
  %v563 = vpop.f32.mrf.mxu0
  %v564 = vadd.f32 %v456, %v563
  %v565 = vpop.f32.mrf.mxu0
  %566 = vdwg.mxu0
  %567 = vmatpush.bf16.msra.mxu0 %v537
  %568 = vmatpush.bf16.msra.mxu0 %v536
  %569 = vmatpush.bf16.msra.mxu0 %v535
  %570 = vmatpush.bf16.msra.mxu0 %v534
  %571 = vmatpush.bf16.msra.mxu0 %v533
  %572 = vmatpush.bf16.msra.mxu0 %v532
  %573 = vmatpush.bf16.msra.mxu0 %v531
  %574 = vmatpush.bf16.msra.mxu0 %v530
  %575 = vmatmul.bf16.gmra.mxu0 %v422
  %v576 = vpop.f32.mrf.mxu0
  %v577 = vadd.f32 %v564, %v576
  %v578 = vpop.f32.mrf.mxu0
  %579 = vdwg.mxu0
  %v580 = vmax.f32 %v577, 0.0
  %v581 = vpack.c.bf16 %v580, %v580
  %v582 = vld [vmem:[%s12] sm:$0xf]
  %v583 = vld [vmem:[%s12 + $0x4] sm:$0xf]
  %v584 = vld [vmem:[%s12 + $0x8] sm:$0xf]
  %v585 = vld [vmem:[%s12 + $0xc] sm:$0xf]
  %v586 = vld [vmem:[%s12 + $0x10] sm:$0xf]
  %v587 = vld [vmem:[%s12 + $0x14] sm:$0xf]
  %v588 = vld [vmem:[%s12 + $0x18] sm:$0xf]
  %v589 = vld [vmem:[%s12 + $0x1c] sm:$0xf]
  %v590 = vld [vmem:[%s12 + $0x20] sm:$0xf]
  %v591 = vld [vmem:[%s12 + $0x24] sm:$0xf]
  %v592 = vld [vmem:[%s12 + $0x28] sm:$0xf]
  %v593 = vld [vmem:[%s12 + $0x2c] sm:$0xf]
  %v594 = vld [vmem:[%s12 + $0x30] sm:$0xf]
  %v595 = vld [vmem:[%s12 + $0x34] sm:$0xf]
  %v596 = vld [vmem:[%s12 + $0x38] sm:$0xf]
  %v597 = vld [vmem:[%s12 + $0x3c] sm:$0xf]
  %v599 = vperm.slane %v55, 0
  %v617 = vunpack.c.l.b16 %v582
  %v618 = vunpack.c.l.b16 %v583
  %v619 = vunpack.c.l.b16 %v584
  %v620 = vunpack.c.l.b16 %v585
  %v621 = vunpack.c.l.b16 %v586
  %v622 = vunpack.c.l.b16 %v587
  %v623 = vunpack.c.l.b16 %v588
  %v624 = vunpack.c.l.b16 %v589
  %v625 = vunpack.c.l.b16 %v590
  %v626 = vunpack.c.l.b16 %v591
  %v627 = vunpack.c.l.b16 %v592
  %v628 = vunpack.c.l.b16 %v593
  %v629 = vunpack.c.l.b16 %v594
  %v630 = vunpack.c.l.b16 %v595
  %v631 = vunpack.c.l.b16 %v596
  %v632 = vunpack.c.l.b16 %v597
  %v633 = vpack.c.b16 %v618, %v617
  %v634 = vpack.c.b16 %v620, %v619
  %v635 = vpack.c.b16 %v622, %v621
  %v636 = vpack.c.b16 %v624, %v623
  %v637 = vpack.c.b16 %v626, %v625
  %v638 = vpack.c.b16 %v628, %v627
  %v639 = vpack.c.b16 %v630, %v629
  %v640 = vpack.c.b16 %v632, %v631
  %649 = vmatpush.bf16.msra.mxu0 %v640
  %650 = vmatpush.bf16.msra.mxu0 %v639
  %651 = vmatpush.bf16.msra.mxu0 %v638
  %652 = vmatpush.bf16.msra.mxu0 %v637
  %653 = vmatpush.bf16.msra.mxu0 %v636
  %654 = vmatpush.bf16.msra.mxu0 %v635
  %655 = vmatpush.bf16.msra.mxu0 %v634
  %656 = vmatpush.bf16.msra.mxu0 %v633
  %657 = vmatmul.bf16.gmra.mxu0 %v581
  %v658 = vpop.f32.mrf.mxu0
  %v659 = vadd.f32 %v599, %v658
  %v660 = vpop.f32.mrf.mxu0
  %661 = vdwg.mxu0
  %663 = vrot.lane.b32.xlu0 %v345, 1
  %v664 = vpop.permute.xlu0 %663
  %vm666 = vcmask 7168
  %v667 = vsel %vm666, %v659, %v664
  %vm668 = vcmask 334848
  %v669 = vsel %vm668, %v667, 0.0
  %670 = vst [vmem:[%s14] sm:$0xff] %v669
  // Predicated region
  $region58: #{weather_regression_forward.1} parent=0 // pred_check
    _
  $region59: #{weather_regression_forward.1} parent=0 // pred_check_branch
    %672 = sbr.rel (0) target = $region61
  $region60: #{weather_regression_forward.1} parent=0 // pred_region
    _
  $region61: #{weather_regression_forward.1} parent=0 // pred_fallthru
    _
  // Predicated region
  $region62: #{weather_regression_forward.1} parent=0 // pred_check
    _
  $region63: #{weather_regression_forward.1} parent=0 // pred_check_branch
    %674 = sbr.rel (0) target = $region65
  $region64: #{weather_regression_forward.1} parent=0 // pred_region
    _
  $region65: #{weather_regression_forward.1} parent=0 // pred_fallthru
    _

</llo_original>
